<compile_context>
chip_gen: v7x
topology: tpu7x:2x2x1
jax: 0.10.0
libtpu: 0.0.40
codegen_flags: <defaults>
</compile_context>

<pallas_src>
import functools

import jax
import jax.numpy as jnp
from jax import lax
from jax.experimental import pallas as pl
from jax.experimental.pallas import tpu as pltpu

HIDDEN = 32
EPS = 1e-5
VMEM_LIMIT = 32 * 1024 * 1024  # explicit scoped-VMEM budget (fits v5e/v6e/v7x)


def _round_up(x, m):
    return (x + m - 1) // m * m


# -----------------------------------------------------------------------------
# Kernel A: per-node MLP head (grid over node row blocks, fully parallel).
#   zpos = relu(x @ Wc + bc)
#   z0   = relu(f_node(LayerNorm([zpos, zm])))   -- concat-free, per-half LN
#   msg1 = z0 @ W_msg1 + b_msg1                  -- first conv's source messages
# -----------------------------------------------------------------------------
def _node_mlp_kernel(x_ref, zm_ref, wc_ref, bc_ref, lga_ref, lba_ref,
                     lgb_ref, lbb_ref, wna_ref, wnb_ref, bnd_ref,
                     w1_ref, b1_ref, z_ref, msg_ref,
                     *, n_real, n_pad, tile, hidden):
    f32 = jnp.float32
    zpos = jnp.maximum(
        jnp.dot(x_ref[...], wc_ref[...], preferred_element_type=f32) + bc_ref[...],
        0.0)
    zm = zm_ref[...]

    # LayerNorm over the *virtual* 64-channel concat, computed per 32-lane half
    # (no 64-lane intermediate, no XLU relayout copy).
    inv_c = 1.0 / (2 * hidden)
    mu = (jnp.sum(zpos, axis=-1, keepdims=True)
          + jnp.sum(zm, axis=-1, keepdims=True)) * inv_c
    dp, dm = zpos - mu, zm - mu
    var = (jnp.sum(dp * dp, axis=-1, keepdims=True)
           + jnp.sum(dm * dm, axis=-1, keepdims=True)) * inv_c
    inv = lax.rsqrt(var + EPS)
    za = dp * inv * lga_ref[...] + lba_ref[...]
    zb = dm * inv * lgb_ref[...] + lbb_ref[...]

    # f_node as two 32x32 matmuls (W_node split row-wise: identical FLOPs).
    z = jnp.maximum(
        jnp.dot(za, wna_ref[...], preferred_element_type=f32)
        + jnp.dot(zb, wnb_ref[...], preferred_element_type=f32)
        + bnd_ref[...], 0.0)

    if n_real != n_pad:  # zero padded rows so they never pollute BN stats / skip
        rows = pl.program_id(0) * tile + lax.broadcasted_iota(jnp.int32, (tile, 1), 0)
        z = jnp.where(rows < n_real, z, 0.0)

    z_ref[...] = z
    msg_ref[...] = jnp.dot(z, w1_ref[...], preferred_element_type=f32) + b1_ref[...]


# -----------------------------------------------------------------------------
# Kernel B: one GeneralConv aggregation (aggr='add', identity skip) + per-row-
# block BatchNorm partial sums.
#   grid = (dst-row blocks [parallel], src-col blocks [arbitrary reduction])
#   h[i_blk] = z[i_blk] + sum_k adj_bf16[i_blk, k_blk] @ msg_bf16[k_blk]
# -----------------------------------------------------------------------------
def _conv_agg_kernel(adj_ref, msg_ref, z_ref, h_ref, s_ref, q_ref, acc_ref):
    k = pl.program_id(1)

    @pl.when(k == 0)
    def _():
        acc_ref[...] = z_ref[...]          # lin_self = Identity skip

    acc_ref[...] += jnp.dot(adj_ref[...], msg_ref[...].astype(jnp.bfloat16),
                            preferred_element_type=jnp.float32)

    @pl.when(k == pl.num_programs(1) - 1)
    def _():
        hacc = acc_ref[...]
        h_ref[...] = hacc
        # two-pass BatchNorm: emit per-row-block sum and sum-of-squares.
        s_ref[0] = jnp.sum(hacc, axis=0, keepdims=True)
        q_ref[0] = jnp.sum(hacc * hacc, axis=0, keepdims=True)


# -----------------------------------------------------------------------------
# Kernel C: finalize BatchNorm from the per-block partial sums, apply affine +
# relu, and emit the next conv's messages (grid over row blocks, parallel).
# -----------------------------------------------------------------------------
def _bn_relu_msg_kernel(h_ref, s_ref, q_ref, g_ref, be_ref, w_ref, b_ref,
                        z_ref, msg_ref, *, n_real, n_pad, tile):
    f32 = jnp.float32
    inv_n = 1.0 / n_real
    mu = jnp.sum(s_ref[:, 0, :], axis=0, keepdims=True) * inv_n      # (1, H)
    ex2 = jnp.sum(q_ref[:, 0, :], axis=0, keepdims=True) * inv_n     # (1, H)
    inv = lax.rsqrt(ex2 - mu * mu + EPS)                             # biased var

    z = jnp.maximum((h_ref[...] - mu) * inv * g_ref[...] + be_ref[...], 0.0)
    if n_real != n_pad:
        rows = pl.program_id(0) * tile + lax.broadcasted_iota(jnp.int32, (tile, 1), 0)
        z = jnp.where(rows < n_real, z, 0.0)

    z_ref[...] = z
    msg_ref[...] = jnp.dot(z, w_ref[...], preferred_element_type=f32) + b_ref[...]


# -----------------------------------------------------------------------------
# Wrapper
# -----------------------------------------------------------------------------
def encoder_forward(x, zm, edge_index, params):
    """x: [N, 2] f32, zm: [N, H] f32, edge_index: [2, E] int32 (row0=src, row1=dst)."""
    n = x.shape[0]
    hd = HIDDEN

    # Tiling policy: (256, 256) bf16 adjacency tiles (128 KiB, double-buffered
    # by the pipeline) once N is large; single full-extent block otherwise.
    if n <= 256:
        tile = _round_up(max(n, 8), 8)
    else:
        tile = 256
    n_pad = _round_up(n, tile)
    nb = n_pad // tile

    # Glue: pad node features, build the bf16 adjacency ONCE (counts <= 256
    # stay exact in bf16; no f32 [N,N] HBM round trip).
    # TODO(synk): for very large / sparse graphs, replace the dense adjacency
    # with a scalar-prefetched sorted-edge-list / CSR gather-accumulate path.
    x_p = jnp.pad(x.astype(jnp.float32), ((0, n_pad - n), (0, 0)))
    zm_p = jnp.pad(zm.astype(jnp.float32), ((0, n_pad - n), (0, 0)))
    src, dst = edge_index[0], edge_index[1]
    adj = jnp.zeros((n_pad, n_pad), jnp.bfloat16).at[dst, src].add(
        jnp.ones(src.shape, jnp.bfloat16))

    # Split parameters for the concat-free LayerNorm / f_node.
    wna, wnb = params["w_node"][:hd], params["w_node"][hd:]
    lga, lgb = params["ln_gamma"][:, :hd], params["ln_gamma"][:, hd:]
    lba, lbb = params["ln_beta"][:, :hd], params["ln_beta"][:, hd:]

    def _whole(shape):
        return pl.BlockSpec(shape, lambda *_: (0,) * len(shape))

    cp_rows = pltpu.CompilerParams(dimension_semantics=("parallel",),
                                   vmem_limit_bytes=VMEM_LIMIT)
    cp_agg = pltpu.CompilerParams(dimension_semantics=("parallel", "arbitrary"),
                                  vmem_limit_bytes=VMEM_LIMIT)

    row1 = pl.BlockSpec((tile, hd), lambda i: (i, 0))

    node_mlp = pl.pallas_call(
        functools.partial(_node_mlp_kernel, n_real=n, n_pad=n_pad, tile=tile,
                          hidden=hd),
        out_shape=(jax.ShapeDtypeStruct((n_pad, hd), jnp.float32),
                   jax.ShapeDtypeStruct((n_pad, hd), jnp.float32)),
        grid_spec=pltpu.PrefetchScalarGridSpec(
            num_scalar_prefetch=0, grid=(nb,),
            in_specs=[pl.BlockSpec((tile, 2), lambda i: (i, 0)), row1,
                      _whole((2, hd)), _whole((1, hd)), _whole((1, hd)),
                      _whole((1, hd)), _whole((1, hd)), _whole((1, hd)),
                      _whole((hd, hd)), _whole((hd, hd)), _whole((1, hd)),
                      _whole((hd, hd)), _whole((1, hd))],
            out_specs=[row1, row1]),
        compiler_params=cp_rows,
    )

    conv_agg = pl.pallas_call(
        _conv_agg_kernel,
        out_shape=(jax.ShapeDtypeStruct((n_pad, hd), jnp.float32),
                   jax.ShapeDtypeStruct((nb, 1, hd), jnp.float32),
                   jax.ShapeDtypeStruct((nb, 1, hd), jnp.float32)),
        grid_spec=pltpu.PrefetchScalarGridSpec(
            num_scalar_prefetch=0, grid=(nb, nb),
            in_specs=[pl.BlockSpec((tile, tile), lambda i, k: (i, k)),
                      pl.BlockSpec((tile, hd), lambda i, k: (k, 0)),
                      pl.BlockSpec((tile, hd), lambda i, k: (i, 0))],
            out_specs=[pl.BlockSpec((tile, hd), lambda i, k: (i, 0)),
                       pl.BlockSpec((1, 1, hd), lambda i, k: (i, 0, 0)),
                       pl.BlockSpec((1, 1, hd), lambda i, k: (i, 0, 0))],
            scratch_shapes=[pltpu.VMEM((tile, hd), jnp.float32)]),
        compiler_params=cp_agg,
        cost_estimate=pl.CostEstimate(
            flops=2 * n_pad * n_pad * hd,
            transcendentals=0,
            bytes_accessed=n_pad * n_pad * 2 + 4 * n_pad * hd * 4),
    )

    def bn_relu_msg(h, s, q, gamma, beta, w_next, b_next):
        return pl.pallas_call(
            functools.partial(_bn_relu_msg_kernel, n_real=n, n_pad=n_pad, tile=tile),
            out_shape=(jax.ShapeDtypeStruct((n_pad, hd), jnp.float32),
                       jax.ShapeDtypeStruct((n_pad, hd), jnp.float32)),
            grid_spec=pltpu.PrefetchScalarGridSpec(
                num_scalar_prefetch=0, grid=(nb,),
                in_specs=[row1,
                          _whole((nb, 1, hd)), _whole((nb, 1, hd)),
                          _whole((1, hd)), _whole((1, hd)),
                          _whole((hd, hd)), _whole((1, hd))],
                out_specs=[row1, row1]),
            compiler_params=cp_rows,
        )(h, s, q, gamma, beta, w_next, b_next)

    # ---- forward ------------------------------------------------------------
    z0, msg1 = node_mlp(x_p, zm_p, params["w_coord"], params["b_coord"],
                        lga, lba, lgb, lbb, wna, wnb, params["b_node"],
                        params["w_msg1"], params["b_msg1"])

    h1, s1, q1 = conv_agg(adj, msg1, z0)
    z1, msg2 = bn_relu_msg(h1, s1, q1, params["bn1_gamma"], params["bn1_beta"],
                           params["w_msg2"], params["b_msg2"])

    h2, s2, q2 = conv_agg(adj, msg2, z1)
    z2, msg3 = bn_relu_msg(h2, s2, q2, params["bn2_gamma"], params["bn2_beta"],
                           params["w_msg3"], params["b_msg3"])

    h3, _, _ = conv_agg(adj, msg3, z2)   # conv3: no BatchNorm / activation
    return h3[:n]


# -----------------------------------------------------------------------------
# Parameters (PyTorch-Linear-style init) and a plain-JAX reference.
# -----------------------------------------------------------------------------
def init_params(key, hidden=HIDDEN):
    ks = jax.random.split(key, 5)

    def lin(k, fan_in, fan_out):
        bound = 1.0 / float(fan_in) ** 0.5
        kw, kb = jax.random.split(k)
        w = jax.random.uniform(kw, (fan_in, fan_out), jnp.float32, -bound, bound)
        b = jax.random.uniform(kb, (1, fan_out), jnp.float32, -bound, bound)
        return w, b

    w_coord, b_coord = lin(ks[0], 2, hidden)           # embedding_coord
    w_node, b_node = lin(ks[1], 2 * hidden, hidden)    # f_node
    w1, b1 = lin(ks[2], hidden, hidden)                # conv1.lin_msg
    w2, b2 = lin(ks[3], hidden, hidden)                # conv2.lin_msg
    w3, b3 = lin(ks[4], hidden, hidden)                # conv3.lin_msg

    return dict(
        w_coord=w_coord, b_coord=b_coord,
        ln_gamma=jnp.ones((1, 2 * hidden), jnp.float32),
        ln_beta=jnp.zeros((1, 2 * hidden), jnp.float32),
        w_node=w_node, b_node=b_node,
        w_msg1=w1, b_msg1=b1,
        w_msg2=w2, b_msg2=b2,
        w_msg3=w3, b_msg3=b3,
        bn1_gamma=jnp.ones((1, hidden), jnp.float32),
        bn1_beta=jnp.zeros((1, hidden), jnp.float32),
        bn2_gamma=jnp.ones((1, hidden), jnp.float32),
        bn2_beta=jnp.zeros((1, hidden), jnp.float32),
    )
    # TODO(synk): edge_norm_enc / edge_dir_enc branches (embedding_edge_*, f_edge)
    # are disabled under the default config and not implemented here.


def reference_forward(x, zm, edge_index, params):
    """Plain-JAX f32 reference matching the PyTorch module (training-mode BN)."""
    n = x.shape[0]
    src, dst = edge_index[0], edge_index[1]
    adj = jnp.zeros((n, n), jnp.float32).at[dst, src].add(1.0)

    def ln(z, g, b):
        mu = jnp.mean(z, axis=-1, keepdims=True)
        var = jnp.mean((z - mu) ** 2, axis=-1, keepdims=True)
        return (z - mu) * lax.rsqrt(var + EPS) * g + b

    def bn(z, g, b):
        mu = jnp.mean(z, axis=0, keepdims=True)
        var = jnp.mean((z - mu) ** 2, axis=0, keepdims=True)
        return (z - mu) * lax.rsqrt(var + EPS) * g + b

    def conv(z, w, b):
        return adj @ (z @ w + b) + z

    zpos = jax.nn.relu(x @ params["w_coord"] + params["b_coord"])
    z = ln(jnp.concatenate([zpos, zm], axis=-1), params["ln_gamma"], params["ln_beta"])
    z = jax.nn.relu(z @ params["w_node"] + params["b_node"])
    z = jax.nn.relu(bn(conv(z, params["w_msg1"], params["b_msg1"]),
                       params["bn1_gamma"], params["bn1_beta"]))
    z = jax.nn.relu(bn(conv(z, params["w_msg2"], params["b_msg2"]),
                       params["bn2_gamma"], params["bn2_beta"]))
    return conv(z, params["w_msg3"], params["b_msg3"])


if __name__ == "__main__":
    key = jax.random.PRNGKey(0)
    k_params, k_x, k_zm, k_e = jax.random.split(key, 4)

    N, E = 16, 32
    params = init_params(k_params)
    x = jax.random.normal(k_x, (N, 2), jnp.float32)          # data.x  (2-D coords)
    zm = jax.random.normal(k_zm, (N, HIDDEN), jnp.float32)   # zm      (external embedding)
    edge_index = jax.random.randint(k_e, (2, E), 0, N, jnp.int32)

    out = jax.block_until_ready(encoder_forward(x, zm, edge_index, params))
    assert out.shape == (N, HIDDEN) and out.dtype == jnp.float32

    ref = jax.block_until_ready(reference_forward(x, zm, edge_index, params))
    assert bool(jnp.all(jnp.isfinite(out)))
    # Loose tolerance: the kernel runs adj/msg on the MXU in bf16 (f32 accumulate).
    assert bool(jnp.allclose(out, ref, rtol=1e-1, atol=1e-1)), \
        float(jnp.max(jnp.abs(out - ref)))
    print("KERNEL_OK")
</pallas_src>

<mosaic_0001>
module attributes {stable_mosaic.version = 11 : i64} {
  func.func @_node_mlp_kernel(%arg0: i32, %arg1: memref<16x2xf32, #tpu.memory_space<vmem>>, %arg2: memref<16x32xf32, #tpu.memory_space<vmem>>, %arg3: memref<2x32xf32, #tpu.memory_space<vmem>>, %arg4: memref<1x32xf32, #tpu.memory_space<vmem>>, %arg5: memref<1x32xf32, #tpu.memory_space<vmem>>, %arg6: memref<1x32xf32, #tpu.memory_space<vmem>>, %arg7: memref<1x32xf32, #tpu.memory_space<vmem>>, %arg8: memref<1x32xf32, #tpu.memory_space<vmem>>, %arg9: memref<32x32xf32, #tpu.memory_space<vmem>>, %arg10: memref<32x32xf32, #tpu.memory_space<vmem>>, %arg11: memref<1x32xf32, #tpu.memory_space<vmem>>, %arg12: memref<32x32xf32, #tpu.memory_space<vmem>>, %arg13: memref<1x32xf32, #tpu.memory_space<vmem>>, %arg14: memref<16x32xf32, #tpu.memory_space<vmem>>, %arg15: memref<16x32xf32, #tpu.memory_space<vmem>>) attributes {dimension_semantics = [#tpu.dimension_semantics<parallel>], iteration_bounds = array<i64: 1>, scalar_prefetch = 0 : i64, scratch_operands = 0 : i64, tpu.core_type = #tpu.core_type<tc>, window_params = [{transform_indices = @transform_0, window_bounds = array<i64: 16, 2>}, {transform_indices = @transform_1, window_bounds = array<i64: 16, 32>}, {pipeline_mode = #tpu.pipeline_mode<synchronous>, transform_indices = @transform_2, window_bounds = array<i64: 2, 32>}, {pipeline_mode = #tpu.pipeline_mode<synchronous>, transform_indices = @transform_3, window_bounds = array<i64: 1, 32>}, {pipeline_mode = #tpu.pipeline_mode<synchronous>, transform_indices = @transform_4, window_bounds = array<i64: 1, 32>}, {pipeline_mode = #tpu.pipeline_mode<synchronous>, transform_indices = @transform_5, window_bounds = array<i64: 1, 32>}, {pipeline_mode = #tpu.pipeline_mode<synchronous>, transform_indices = @transform_6, window_bounds = array<i64: 1, 32>}, {pipeline_mode = #tpu.pipeline_mode<synchronous>, transform_indices = @transform_7, window_bounds = array<i64: 1, 32>}, {pipeline_mode = #tpu.pipeline_mode<synchronous>, transform_indices = @transform_8, window_bounds = array<i64: 32, 32>}, {pipeline_mode = #tpu.pipeline_mode<synchronous>, transform_indices = @transform_9, window_bounds = array<i64: 32, 32>}, {pipeline_mode = #tpu.pipeline_mode<synchronous>, transform_indices = @transform_10, window_bounds = array<i64: 1, 32>}, {pipeline_mode = #tpu.pipeline_mode<synchronous>, transform_indices = @transform_11, window_bounds = array<i64: 32, 32>}, {pipeline_mode = #tpu.pipeline_mode<synchronous>, transform_indices = @transform_12, window_bounds = array<i64: 1, 32>}, {transform_indices = @transform_13, window_bounds = array<i64: 16, 32>}, {transform_indices = @transform_14, window_bounds = array<i64: 16, 32>}]} {
    %c0 = arith.constant 0 : index
    %c0_0 = arith.constant 0 : index
    %0 = vector.load %arg1[%c0, %c0_0] : memref<16x2xf32, #tpu.memory_space<vmem>>, vector<16x2xf32>
    %c0_1 = arith.constant 0 : index
    %c0_2 = arith.constant 0 : index
    %1 = vector.load %arg3[%c0_1, %c0_2] : memref<2x32xf32, #tpu.memory_space<vmem>>, vector<2x32xf32>
    %cst = arith.constant dense<0.000000e+00> : vector<16x32xf32>
    %2 = tpu.matmul %0, %1, %cst {dimension_numbers = #tpu.dot_dimension_numbers<[1], [0], [0], [1], [0, 0, 1, 1], [], []>} : vector<16x2xf32>, vector<2x32xf32>, vector<16x32xf32> -> vector<16x32xf32>
    %c0_3 = arith.constant 0 : index
    %c0_4 = arith.constant 0 : index
    %3 = vector.load %arg4[%c0_3, %c0_4] : memref<1x32xf32, #tpu.memory_space<vmem>>, vector<1x32xf32>
    %4 = vector.broadcast %3 : vector<1x32xf32> to vector<16x32xf32>
    %5 = arith.addf %2, %4 : vector<16x32xf32>
    %cst_5 = arith.constant 0.000000e+00 : f32
    %6 = vector.broadcast %cst_5 : f32 to vector<16x32xf32>
    %7 = arith.maximumf %5, %6 : vector<16x32xf32>
    %c0_6 = arith.constant 0 : index
    %c0_7 = arith.constant 0 : index
    %8 = vector.load %arg2[%c0_6, %c0_7] : memref<16x32xf32, #tpu.memory_space<vmem>>, vector<16x32xf32>
    %cst_8 = arith.constant dense<0.000000e+00> : vector<16xf32>
    %9 = vector.multi_reduction <add>, %7, %cst_8 [1] : vector<16x32xf32> to vector<16xf32>
    %10 = vector.shape_cast %9 : vector<16xf32> to vector<16x1xf32>
    %cst_9 = arith.constant dense<0.000000e+00> : vector<16xf32>
    %11 = vector.multi_reduction <add>, %8, %cst_9 [1] : vector<16x32xf32> to vector<16xf32>
    %12 = vector.shape_cast %11 : vector<16xf32> to vector<16x1xf32>
    %13 = arith.addf %10, %12 : vector<16x1xf32>
    %cst_10 = arith.constant 1.562500e-02 : f32
    %14 = vector.broadcast %cst_10 : f32 to vector<16x1xf32>
    %15 = arith.mulf %13, %14 : vector<16x1xf32>
    %16 = vector.broadcast %15 : vector<16x1xf32> to vector<16x32xf32>
    %17 = arith.subf %7, %16 : vector<16x32xf32>
    %18 = vector.broadcast %15 : vector<16x1xf32> to vector<16x32xf32>
    %19 = arith.subf %8, %18 : vector<16x32xf32>
    %20 = arith.mulf %17, %17 : vector<16x32xf32>
    %cst_11 = arith.constant dense<0.000000e+00> : vector<16xf32>
    %21 = vector.multi_reduction <add>, %20, %cst_11 [1] : vector<16x32xf32> to vector<16xf32>
    %22 = vector.shape_cast %21 : vector<16xf32> to vector<16x1xf32>
    %23 = arith.mulf %19, %19 : vector<16x32xf32>
    %cst_12 = arith.constant dense<0.000000e+00> : vector<16xf32>
    %24 = vector.multi_reduction <add>, %23, %cst_12 [1] : vector<16x32xf32> to vector<16xf32>
    %25 = vector.shape_cast %24 : vector<16xf32> to vector<16x1xf32>
    %26 = arith.addf %22, %25 : vector<16x1xf32>
    %cst_13 = arith.constant 1.562500e-02 : f32
    %27 = vector.broadcast %cst_13 : f32 to vector<16x1xf32>
    %28 = arith.mulf %26, %27 : vector<16x1xf32>
    %cst_14 = arith.constant 9.99999974E-6 : f32
    %29 = vector.broadcast %cst_14 : f32 to vector<16x1xf32>
    %30 = arith.addf %28, %29 : vector<16x1xf32>
    %31 = math.rsqrt %30 : vector<16x1xf32>
    %32 = vector.broadcast %31 : vector<16x1xf32> to vector<16x32xf32>
    %33 = arith.mulf %17, %32 : vector<16x32xf32>
    %c0_15 = arith.constant 0 : index
    %c0_16 = arith.constant 0 : index
    %34 = vector.load %arg5[%c0_15, %c0_16] : memref<1x32xf32, #tpu.memory_space<vmem>>, vector<1x32xf32>
    %35 = vector.broadcast %34 : vector<1x32xf32> to vector<16x32xf32>
    %36 = arith.mulf %33, %35 : vector<16x32xf32>
    %c0_17 = arith.constant 0 : index
    %c0_18 = arith.constant 0 : index
    %37 = vector.load %arg6[%c0_17, %c0_18] : memref<1x32xf32, #tpu.memory_space<vmem>>, vector<1x32xf32>
    %38 = vector.broadcast %37 : vector<1x32xf32> to vector<16x32xf32>
    %39 = arith.addf %36, %38 : vector<16x32xf32>
    %40 = vector.broadcast %31 : vector<16x1xf32> to vector<16x32xf32>
    %41 = arith.mulf %19, %40 : vector<16x32xf32>
    %c0_19 = arith.constant 0 : index
    %c0_20 = arith.constant 0 : index
    %42 = vector.load %arg7[%c0_19, %c0_20] : memref<1x32xf32, #tpu.memory_space<vmem>>, vector<1x32xf32>
    %43 = vector.broadcast %42 : vector<1x32xf32> to vector<16x32xf32>
    %44 = arith.mulf %41, %43 : vector<16x32xf32>
    %c0_21 = arith.constant 0 : index
    %c0_22 = arith.constant 0 : index
    %45 = vector.load %arg8[%c0_21, %c0_22] : memref<1x32xf32, #tpu.memory_space<vmem>>, vector<1x32xf32>
    %46 = vector.broadcast %45 : vector<1x32xf32> to vector<16x32xf32>
    %47 = arith.addf %44, %46 : vector<16x32xf32>
    %c0_23 = arith.constant 0 : index
    %c0_24 = arith.constant 0 : index
    %48 = vector.load %arg9[%c0_23, %c0_24] : memref<32x32xf32, #tpu.memory_space<vmem>>, vector<32x32xf32>
    %cst_25 = arith.constant dense<0.000000e+00> : vector<16x32xf32>
    %49 = tpu.matmul %39, %48, %cst_25 {dimension_numbers = #tpu.dot_dimension_numbers<[1], [0], [0], [1], [0, 0, 1, 1], [], []>} : vector<16x32xf32>, vector<32x32xf32>, vector<16x32xf32> -> vector<16x32xf32>
    %c0_26 = arith.constant 0 : index
    %c0_27 = arith.constant 0 : index
    %50 = vector.load %arg10[%c0_26, %c0_27] : memref<32x32xf32, #tpu.memory_space<vmem>>, vector<32x32xf32>
    %cst_28 = arith.constant dense<0.000000e+00> : vector<16x32xf32>
    %51 = tpu.matmul %47, %50, %cst_28 {dimension_numbers = #tpu.dot_dimension_numbers<[1], [0], [0], [1], [0, 0, 1, 1], [], []>} : vector<16x32xf32>, vector<32x32xf32>, vector<16x32xf32> -> vector<16x32xf32>
    %52 = arith.addf %49, %51 : vector<16x32xf32>
    %c0_29 = arith.constant 0 : index
    %c0_30 = arith.constant 0 : index
    %53 = vector.load %arg11[%c0_29, %c0_30] : memref<1x32xf32, #tpu.memory_space<vmem>>, vector<1x32xf32>
    %54 = vector.broadcast %53 : vector<1x32xf32> to vector<16x32xf32>
    %55 = arith.addf %52, %54 : vector<16x32xf32>
    %cst_31 = arith.constant 0.000000e+00 : f32
    %56 = vector.broadcast %cst_31 : f32 to vector<16x32xf32>
    %57 = arith.maximumf %55, %56 : vector<16x32xf32>
    %c0_32 = arith.constant 0 : index
    %c0_33 = arith.constant 0 : index
    %58 = vector.load %arg14[%c0_32, %c0_33] : memref<16x32xf32, #tpu.memory_space<vmem>>, vector<16x32xf32>
    tpu.vector_store %arg14[%c0_32, %c0_33], %57 {strides = array<i32>} : memref<16x32xf32, #tpu.memory_space<vmem>>, vector<16x32xf32>,
    %c0_34 = arith.constant 0 : index
    %c0_35 = arith.constant 0 : index
    %59 = vector.load %arg12[%c0_34, %c0_35] : memref<32x32xf32, #tpu.memory_space<vmem>>, vector<32x32xf32>
    %cst_36 = arith.constant dense<0.000000e+00> : vector<16x32xf32>
    %60 = tpu.matmul %57, %59, %cst_36 {dimension_numbers = #tpu.dot_dimension_numbers<[1], [0], [0], [1], [0, 0, 1, 1], [], []>} : vector<16x32xf32>, vector<32x32xf32>, vector<16x32xf32> -> vector<16x32xf32>
    %c0_37 = arith.constant 0 : index
    %c0_38 = arith.constant 0 : index
    %61 = vector.load %arg13[%c0_37, %c0_38] : memref<1x32xf32, #tpu.memory_space<vmem>>, vector<1x32xf32>
    %62 = vector.broadcast %61 : vector<1x32xf32> to vector<16x32xf32>
    %63 = arith.addf %60, %62 : vector<16x32xf32>
    %c0_39 = arith.constant 0 : index
    %c0_40 = arith.constant 0 : index
    %64 = vector.load %arg15[%c0_39, %c0_40] : memref<16x32xf32, #tpu.memory_space<vmem>>, vector<16x32xf32>
    tpu.vector_store %arg15[%c0_39, %c0_40], %63 {strides = array<i32>} : memref<16x32xf32, #tpu.memory_space<vmem>>, vector<16x32xf32>,
    return
  }
  func.func @transform_0(%arg0: i32) -> (i32, i32) {
    %c0_i32 = arith.constant 0 : i32
    %c0_i32_0 = arith.constant 0 : i32
    return %arg0, %c0_i32 : i32, i32
  }
  func.func @transform_1(%arg0: i32) -> (i32, i32) {
    %c0_i32 = arith.constant 0 : i32
    %c0_i32_0 = arith.constant 0 : i32
    return %arg0, %c0_i32 : i32, i32
  }
  func.func @transform_2(%arg0: i32) -> (i32, i32) {
    %c0_i32 = arith.constant 0 : i32
    %c0_i32_0 = arith.constant 0 : i32
    %c0_i32_1 = arith.constant 0 : i32
    return %c0_i32, %c0_i32_0 : i32, i32
  }
  func.func @transform_3(%arg0: i32) -> (i32, i32) {
    %c0_i32 = arith.constant 0 : i32
    %c0_i32_0 = arith.constant 0 : i32
    %c0_i32_1 = arith.constant 0 : i32
    return %c0_i32, %c0_i32_0 : i32, i32
  }
  func.func @transform_4(%arg0: i32) -> (i32, i32) {
    %c0_i32 = arith.constant 0 : i32
    %c0_i32_0 = arith.constant 0 : i32
    %c0_i32_1 = arith.constant 0 : i32
    return %c0_i32, %c0_i32_0 : i32, i32
  }
  func.func @transform_5(%arg0: i32) -> (i32, i32) {
    %c0_i32 = arith.constant 0 : i32
    %c0_i32_0 = arith.constant 0 : i32
    %c0_i32_1 = arith.constant 0 : i32
    return %c0_i32, %c0_i32_0 : i32, i32
  }
  func.func @transform_6(%arg0: i32) -> (i32, i32) {
    %c0_i32 = arith.constant 0 : i32
    %c0_i32_0 = arith.constant 0 : i32
    %c0_i32_1 = arith.constant 0 : i32
    return %c0_i32, %c0_i32_0 : i32, i32
  }
  func.func @transform_7(%arg0: i32) -> (i32, i32) {
    %c0_i32 = arith.constant 0 : i32
    %c0_i32_0 = arith.constant 0 : i32
    %c0_i32_1 = arith.constant 0 : i32
    return %c0_i32, %c0_i32_0 : i32, i32
  }
  func.func @transform_8(%arg0: i32) -> (i32, i32) {
    %c0_i32 = arith.constant 0 : i32
    %c0_i32_0 = arith.constant 0 : i32
    %c0_i32_1 = arith.constant 0 : i32
    return %c0_i32, %c0_i32_0 : i32, i32
  }
  func.func @transform_9(%arg0: i32) -> (i32, i32) {
    %c0_i32 = arith.constant 0 : i32
    %c0_i32_0 = arith.constant 0 : i32
    %c0_i32_1 = arith.constant 0 : i32
    return %c0_i32, %c0_i32_0 : i32, i32
  }
  func.func @transform_10(%arg0: i32) -> (i32, i32) {
    %c0_i32 = arith.constant 0 : i32
    %c0_i32_0 = arith.constant 0 : i32
    %c0_i32_1 = arith.constant 0 : i32
    return %c0_i32, %c0_i32_0 : i32, i32
  }
  func.func @transform_11(%arg0: i32) -> (i32, i32) {
    %c0_i32 = arith.constant 0 : i32
    %c0_i32_0 = arith.constant 0 : i32
    %c0_i32_1 = arith.constant 0 : i32
    return %c0_i32, %c0_i32_0 : i32, i32
  }
  func.func @transform_12(%arg0: i32) -> (i32, i32) {
    %c0_i32 = arith.constant 0 : i32
    %c0_i32_0 = arith.constant 0 : i32
    %c0_i32_1 = arith.constant 0 : i32
    return %c0_i32, %c0_i32_0 : i32, i32
  }
  func.func @transform_13(%arg0: i32) -> (i32, i32) {
    %c0_i32 = arith.constant 0 : i32
    %c0_i32_0 = arith.constant 0 : i32
    return %arg0, %c0_i32 : i32, i32
  }
  func.func @transform_14(%arg0: i32) -> (i32, i32) {
    %c0_i32 = arith.constant 0 : i32
    %c0_i32_0 = arith.constant 0 : i32
    return %arg0, %c0_i32 : i32, i32
  }
}

</mosaic_0001>

<llo_original>
// kernel: tpu_custom_call.1
$region0: #{tpu_custom_call.1}
  #allocation0 [shape = 'u32[]', space=smem, size = 0x4, offset = 0x4, fixed_abs, tag = 'smem constant byte address 0x4 - core index']
  #allocation1 [shape = 'u32[144,128]{1,0:T(1,128)}', space=vmem, size = 0x12000, scoped, tag = 'internal scratch']
  %s0 = inlined_call_operand.vmem [shape: f32[16,2], index: 0, kind: input, shape index: {}]
  %s1 = inlined_call_operand.vmem [shape: f32[16,32], index: 1, kind: input, shape index: {}]
  %s2 = inlined_call_operand.hbm [shape: f32[2,32], index: 2, kind: input, shape index: {}]
  %s3 = inlined_call_operand.hbm [shape: f32[1,32], index: 3, kind: input, shape index: {}]
  %s4 = inlined_call_operand.hbm [shape: f32[1,32], index: 4, kind: input, shape index: {}]
  %s5 = inlined_call_operand.hbm [shape: f32[1,32], index: 5, kind: input, shape index: {}]
  %s6 = inlined_call_operand.hbm [shape: f32[1,32], index: 6, kind: input, shape index: {}]
  %s7 = inlined_call_operand.hbm [shape: f32[1,32], index: 7, kind: input, shape index: {}]
  %s8 = inlined_call_operand.vmem [shape: f32[32,32], index: 8, kind: input, shape index: {}]
  %s9 = inlined_call_operand.hbm [shape: f32[32,32], index: 9, kind: input, shape index: {}]
  %s10 = inlined_call_operand.vmem [shape: f32[1,32], index: 10, kind: input, shape index: {}]
  %s11 = inlined_call_operand.hbm [shape: f32[32,32], index: 11, kind: input, shape index: {}]
  %s12 = inlined_call_operand.vmem [shape: f32[1,32], index: 12, kind: input, shape index: {}]
  %s13 = inlined_call_operand.hbm [shape: f32[16,32], index: 13, kind: output, shape index: {0}]
  %s14 = inlined_call_operand.hbm [shape: f32[16,32], index: 14, kind: output, shape index: {1}]
  %15 = xla_tuple %s13, %s14
  %s16 = sld [smem:[#allocation0]]
  $region102: #{tpu_custom_call.1} parent=0
    _
  %s18 = ssub.s32 1, %s16
  %s19 = scalar_select 0, %s18, %s16
  $region1: #{tpu_custom_call.1} parent=0
    #allocation2 [shape = 'u8[1024]{0}', space=vmem, size = 0x400, scoped, tag = 'input window, operand 2, single buffered']
    #allocation3 [shape = 's32[1]{0}', space=sflag, size = 0x4, scoped, tag = 'scoped memory for tpu_custom_call.1']
    #allocation4 [shape = 's32[1]{0}', space=sflag, size = 0x4, scoped, tag = 'scoped memory for tpu_custom_call.1']
    #allocation5 [shape = 'u8[512]{0}', space=vmem, size = 0x400, scoped, tag = 'input window, operand 3, single buffered']
    #allocation6 [shape = 's32[1]{0}', space=sflag, size = 0x4, scoped, tag = 'scoped memory for tpu_custom_call.1']
    #allocation7 [shape = 'u8[512]{0}', space=vmem, size = 0x400, scoped, tag = 'input window, operand 4, single buffered']
    #allocation8 [shape = 'u8[512]{0}', space=vmem, size = 0x400, scoped, tag = 'input window, operand 5, single buffered']
    #allocation9 [shape = 's32[1]{0}', space=sflag, size = 0x4, scoped, tag = 'scoped memory for tpu_custom_call.1']
    #allocation10 [shape = 'u8[512]{0}', space=vmem, size = 0x400, scoped, tag = 'input window, operand 6, single buffered']
    #allocation11 [shape = 'u8[512]{0}', space=vmem, size = 0x400, scoped, tag = 'input window, operand 7, single buffered']
    #allocation12 [shape = 's32[1]{0}', space=sflag, size = 0x4, scoped, tag = 'scoped memory for tpu_custom_call.1']
    #allocation13 [shape = 'u8[16384]{0}', space=vmem, size = 0x4000, scoped, tag = 'input window, operand 9, single buffered']
    #allocation14 [shape = 'u8[16384]{0}', space=vmem, size = 0x4000, scoped, tag = 'input window, operand 11, single buffered']
    #allocation15 [shape = 's32[1]{0}', space=sflag, size = 0x4, scoped, tag = 'scoped memory for tpu_custom_call.1']
    #allocation16 [shape = 'u8[8192]{0}', space=vmem, size = 0x2000, scoped, tag = 'output window, operand 0, single buffered']
    #allocation17 [shape = 'u8[8192]{0}', space=vmem, size = 0x2000, scoped, tag = 'output window, operand 1, single buffered']
    #allocation18 [shape = 's32[1]{0}', space=sflag, size = 0x4, scoped, tag = 'scoped memory for tpu_custom_call.1']
    %20 = vsyncpa [#allocation3], 0
    %21 = vsyncpa [#allocation6], 0
    %22 = vsyncpa [#allocation9], 0
    %23 = vsyncpa [#allocation12], 0
    %24 = vsyncpa [#allocation15], 0
    %25 = vsyncpa [#allocation4], 0
    %26 = vsyncpa [#allocation18], 0
    // Predicated region
    $region2: #{tpu_custom_call.1} parent=1 // pred_check
      _
    $region3: #{tpu_custom_call.1} parent=1 // pred_check_branch
      %28 = sbr.rel (0) target = $region5
    $region4: #{tpu_custom_call.1} parent=1 // pred_region
      _
    $region5: #{tpu_custom_call.1} parent=1 // pred_fallthru
      _
    // Predicated region
    $region6: #{tpu_custom_call.1} parent=1 // pred_check
      _
    $region7: #{tpu_custom_call.1} parent=1 // pred_check_branch
      %30 = sbr.rel (0) target = $region9
    $region8: #{tpu_custom_call.1} parent=1 // pred_region
      _
    $region9: #{tpu_custom_call.1} parent=1 // pred_fallthru
      _
    // Predicated region
    $region10: #{tpu_custom_call.1} parent=1 // pred_check
      _
    $region11: #{tpu_custom_call.1} parent=1 // pred_check_branch
      %32 = sbr.rel (0) target = $region13
    $region12: #{tpu_custom_call.1} parent=1 // pred_region
      %s34 = ssub.s32 32, 32
      %35 = vsyncadd [#allocation3], %s34
      %s37 = sshll.u32 [#allocation2], 4
      %s38 = int_to_ptr.vmem [resolvable:$true] %s37
      %40 = dma.hbm_to_vmem [thread:$0]  %s2, 32, %s38, [#allocation3]
    $region13: #{tpu_custom_call.1} parent=1 // pred_fallthru
      _
    // Predicated region
    $region14: #{tpu_custom_call.1} parent=1 // pred_check
      _
    $region15: #{tpu_custom_call.1} parent=1 // pred_check_branch
      %42 = sbr.rel (0) target = $region17
    $region16: #{tpu_custom_call.1} parent=1 // pred_region
      %s44 = ssub.s32 16, 16
      %45 = vsyncadd [#allocation6], %s44
      %s47 = sshll.u32 [#allocation5], 4
      %s48 = int_to_ptr.vmem [resolvable:$true] %s47
      %50 = dma.hbm_to_vmem [thread:$0]  %s3, 16, %s48, [#allocation6]
    $region17: #{tpu_custom_call.1} parent=1 // pred_fallthru
      _
    // Predicated region
    $region18: #{tpu_custom_call.1} parent=1 // pred_check
      _
    $region19: #{tpu_custom_call.1} parent=1 // pred_check_branch
      %52 = sbr.rel (0) target = $region21
    $region20: #{tpu_custom_call.1} parent=1 // pred_region
      %s54 = ssub.s32 16, 16
      %55 = vsyncadd [#allocation6], %s54
      %s57 = sshll.u32 [#allocation7], 4
      %s58 = int_to_ptr.vmem [resolvable:$true] %s57
      %60 = dma.hbm_to_vmem [thread:$0]  %s4, 16, %s58, [#allocation6]
    $region21: #{tpu_custom_call.1} parent=1 // pred_fallthru
      _
    // Predicated region
    $region22: #{tpu_custom_call.1} parent=1 // pred_check
      _
    $region23: #{tpu_custom_call.1} parent=1 // pred_check_branch
      %62 = sbr.rel (0) target = $region25
    $region24: #{tpu_custom_call.1} parent=1 // pred_region
      %s64 = ssub.s32 16, 16
      %65 = vsyncadd [#allocation9], %s64
      %s67 = sshll.u32 [#allocation8], 4
      %s68 = int_to_ptr.vmem [resolvable:$true] %s67
      %70 = dma.hbm_to_vmem [thread:$0]  %s5, 16, %s68, [#allocation9]
    $region25: #{tpu_custom_call.1} parent=1 // pred_fallthru
      _
    // Predicated region
    $region26: #{tpu_custom_call.1} parent=1 // pred_check
      _
    $region27: #{tpu_custom_call.1} parent=1 // pred_check_branch
      %72 = sbr.rel (0) target = $region29
    $region28: #{tpu_custom_call.1} parent=1 // pred_region
      %s74 = ssub.s32 16, 16
      %75 = vsyncadd [#allocation9], %s74
      %s77 = sshll.u32 [#allocation10], 4
      %s78 = int_to_ptr.vmem [resolvable:$true] %s77
      %80 = dma.hbm_to_vmem [thread:$0]  %s6, 16, %s78, [#allocation9]
    $region29: #{tpu_custom_call.1} parent=1 // pred_fallthru
      _
    // Predicated region
    $region30: #{tpu_custom_call.1} parent=1 // pred_check
      _
    $region31: #{tpu_custom_call.1} parent=1 // pred_check_branch
      %82 = sbr.rel (0) target = $region33
    $region32: #{tpu_custom_call.1} parent=1 // pred_region
      %s84 = ssub.s32 16, 16
      %85 = vsyncadd [#allocation12], %s84
      %s87 = sshll.u32 [#allocation11], 4
      %s88 = int_to_ptr.vmem [resolvable:$true] %s87
      %90 = dma.hbm_to_vmem [thread:$0]  %s7, 16, %s88, [#allocation12]
    $region33: #{tpu_custom_call.1} parent=1 // pred_fallthru
      _
    // Predicated region
    $region34: #{tpu_custom_call.1} parent=1 // pred_check
      _
    $region35: #{tpu_custom_call.1} parent=1 // pred_check_branch
      %92 = sbr.rel (0) target = $region37
    $region36: #{tpu_custom_call.1} parent=1 // pred_region
      _
    $region37: #{tpu_custom_call.1} parent=1 // pred_fallthru
      _
    // Predicated region
    $region38: #{tpu_custom_call.1} parent=1 // pred_check
      _
    $region39: #{tpu_custom_call.1} parent=1 // pred_check_branch
      %94 = sbr.rel (0) target = $region41
    $region40: #{tpu_custom_call.1} parent=1 // pred_region
      %s96 = ssub.s32 512, 512
      %97 = vsyncadd [#allocation12], %s96
      %s98 = sshll.u32 [#allocation13], 4
      %s99 = int_to_ptr.vmem [resolvable:$true] %s98
      %104 = dma.hbm_to_vmem [thread:$0]  %s9, 512, %s99, [#allocation12], 128, 128, 8
    $region41: #{tpu_custom_call.1} parent=1 // pred_fallthru
      _
    // Predicated region
    $region42: #{tpu_custom_call.1} parent=1 // pred_check
      _
    $region43: #{tpu_custom_call.1} parent=1 // pred_check_branch
      %106 = sbr.rel (0) target = $region45
    $region44: #{tpu_custom_call.1} parent=1 // pred_region
      _
    $region45: #{tpu_custom_call.1} parent=1 // pred_fallthru
      _
    // Predicated region
    $region46: #{tpu_custom_call.1} parent=1 // pred_check
      _
    $region47: #{tpu_custom_call.1} parent=1 // pred_check_branch
      %108 = sbr.rel (0) target = $region49
    $region48: #{tpu_custom_call.1} parent=1 // pred_region
      %s110 = ssub.s32 512, 512
      %111 = vsyncadd [#allocation15], %s110
      %s112 = sshll.u32 [#allocation14], 4
      %s113 = int_to_ptr.vmem [resolvable:$true] %s112
      %118 = dma.hbm_to_vmem [thread:$0]  %s11, 512, %s113, [#allocation15], 128, 128, 8
    $region49: #{tpu_custom_call.1} parent=1 // pred_fallthru
      _
    // Predicated region
    $region50: #{tpu_custom_call.1} parent=1 // pred_check
      _
    $region51: #{tpu_custom_call.1} parent=1 // pred_check_branch
      %120 = sbr.rel (0) target = $region53
    $region52: #{tpu_custom_call.1} parent=1 // pred_region
      _
    $region53: #{tpu_custom_call.1} parent=1 // pred_fallthru
      _
    // Predicated region
    $region54: #{tpu_custom_call.1} parent=1 // pred_check
      _
    $region55: #{tpu_custom_call.1} parent=1 // pred_check_branch
      %122 = sbr.rel (0) target = $region57
    $region56: #{tpu_custom_call.1} parent=1 // pred_region
      %123 = dma.done [#allocation3], 32
    $region57: #{tpu_custom_call.1} parent=1 // pred_fallthru
      _
    // Predicated region
    $region58: #{tpu_custom_call.1} parent=1 // pred_check
      _
    $region59: #{tpu_custom_call.1} parent=1 // pred_check_branch
      %125 = sbr.rel (0) target = $region61
    $region60: #{tpu_custom_call.1} parent=1 // pred_region
      %126 = dma.done [#allocation6], 16
    $region61: #{tpu_custom_call.1} parent=1 // pred_fallthru
      _
    // Predicated region
    $region62: #{tpu_custom_call.1} parent=1 // pred_check
      _
    $region63: #{tpu_custom_call.1} parent=1 // pred_check_branch
      %128 = sbr.rel (0) target = $region65
    $region64: #{tpu_custom_call.1} parent=1 // pred_region
      %129 = dma.done [#allocation6], 16
    $region65: #{tpu_custom_call.1} parent=1 // pred_fallthru
      _
    // Predicated region
    $region66: #{tpu_custom_call.1} parent=1 // pred_check
      _
    $region67: #{tpu_custom_call.1} parent=1 // pred_check_branch
      %131 = sbr.rel (0) target = $region69
    $region68: #{tpu_custom_call.1} parent=1 // pred_region
      %132 = dma.done [#allocation9], 16
    $region69: #{tpu_custom_call.1} parent=1 // pred_fallthru
      _
    // Predicated region
    $region70: #{tpu_custom_call.1} parent=1 // pred_check
      _
    $region71: #{tpu_custom_call.1} parent=1 // pred_check_branch
      %134 = sbr.rel (0) target = $region73
    $region72: #{tpu_custom_call.1} parent=1 // pred_region
      %135 = dma.done [#allocation9], 16
    $region73: #{tpu_custom_call.1} parent=1 // pred_fallthru
      _
    // Predicated region
    $region74: #{tpu_custom_call.1} parent=1 // pred_check
      _
    $region75: #{tpu_custom_call.1} parent=1 // pred_check_branch
      %137 = sbr.rel (0) target = $region77
    $region76: #{tpu_custom_call.1} parent=1 // pred_region
      %138 = dma.done [#allocation12], 16
    $region77: #{tpu_custom_call.1} parent=1 // pred_fallthru
      _
    // Predicated region
    $region78: #{tpu_custom_call.1} parent=1 // pred_check
      _
    $region79: #{tpu_custom_call.1} parent=1 // pred_check_branch
      %140 = sbr.rel (0) target = $region81
    $region80: #{tpu_custom_call.1} parent=1 // pred_region
      %141 = dma.done [#allocation12], 512
    $region81: #{tpu_custom_call.1} parent=1 // pred_fallthru
      _
    // Predicated region
    $region82: #{tpu_custom_call.1} parent=1 // pred_check
      _
    $region83: #{tpu_custom_call.1} parent=1 // pred_check_branch
      %143 = sbr.rel (0) target = $region85
    $region84: #{tpu_custom_call.1} parent=1 // pred_region
      %144 = dma.done [#allocation15], 512
    $region85: #{tpu_custom_call.1} parent=1 // pred_fallthru
      _
    %v145 = vld [vmem:[%s0] sm:$0xff]
    %v146 = vld [vmem:[%s0 + $0x8] sm:$0xff]
    %v147 = vld [vmem:[#allocation2] sm:$0x3]
    %v148 = vld [vmem:[#allocation5] sm:$0x1]
    %v150 = vlaneseq
    %v151 = vshrl.u32 %v150, 7
    %v152 = vsub.s32 0, %v151
    %v153 = vrot.slane %v148, %v152
    %vm155 = vcmask 15360
    %v157 = vsel %vm155, %v145, 0
    %v160 = vsel %vm155, %v146, 0
    %vm162 = vcmask 1041408
    %v164 = vsel %vm162, %v147, 0
    %166 = vmatprep.subr.mxu0 0.0
    %167 = vmatpush1.msra.mxu0 %v164
    %168 = vmatprep.subr.mxu0 0.0
    %169 = vmatpush1.msra.mxu0 0.0
    %170 = vmatprep.subr.mxu0 0.0
    %171 = vmatpush1.msra.mxu0 0.0
    %172 = vmatprep.subr.mxu0 0.0
    %173 = vmatpush1.msra.mxu0 0.0
    %174 = vmatprep.subr.mxu0 0.0
    %175 = vmatpush1.msra.mxu0 0.0
    %176 = vmatprep.subr.mxu0 0.0
    %177 = vmatpush1.msra.mxu0 0.0
    %178 = vmatprep.subr.mxu0 0.0
    %179 = vmatpush1.msra.mxu0 0.0
    %180 = vmatprep.subr.mxu0 0.0
    %181 = vmatpush1.msra.mxu0 0.0
    %182 = vmatprep.subr.mxu0 0.0
    %183 = vmatpush1.msra.mxu0 0.0
    %184 = vmatprep.subr.mxu0 0.0
    %185 = vmatpush1.msra.mxu0 0.0
    %186 = vmatprep.subr.mxu0 0.0
    %187 = vmatpush1.msra.mxu0 0.0
    %188 = vmatprep.subr.mxu0 0.0
    %189 = vmatpush1.msra.mxu0 0.0
    %190 = vmatprep.subr.mxu0 0.0
    %191 = vmatpush1.msra.mxu0 0.0
    %192 = vmatprep.subr.mxu0 0.0
    %193 = vmatpush1.msra.mxu0 0.0
    %194 = vmatprep.subr.mxu0 0.0
    %195 = vmatpush1.msra.mxu0 0.0
    %196 = vmatprep.subr.mxu0 0.0
    %197 = vmatpush1.msra.mxu0 0.0
    %198 = vmatprep.subr.mxu0 0.0
    %199 = vmatpush1.msra.mxu0 0.0
    %200 = vmatprep.subr.mxu0 0.0
    %201 = vmatpush1.msra.mxu0 0.0
    %202 = vmatprep.subr.mxu0 0.0
    %203 = vmatpush1.msra.mxu0 0.0
    %204 = vmatprep.subr.mxu0 0.0
    %205 = vmatpush1.msra.mxu0 0.0
    %206 = vmatprep.subr.mxu0 0.0
    %207 = vmatpush1.msra.mxu0 0.0
    %208 = vmatprep.subr.mxu0 0.0
    %209 = vmatpush1.msra.mxu0 0.0
    %210 = vmatprep.subr.mxu0 0.0
    %211 = vmatpush1.msra.mxu0 0.0
    %212 = vmatprep.subr.mxu0 0.0
    %213 = vmatpush1.msra.mxu0 0.0
    %214 = vmatprep.subr.mxu0 0.0
    %215 = vmatpush1.msra.mxu0 0.0
    %216 = vmatprep.subr.mxu0 0.0
    %217 = vmatpush1.msra.mxu0 0.0
    %218 = vmatprep.subr.mxu0 0.0
    %219 = vmatpush1.msra.mxu0 0.0
    %220 = vmatprep.subr.mxu0 0.0
    %221 = vmatpush1.msra.mxu0 0.0
    %222 = vmatprep.subr.mxu0 0.0
    %223 = vmatpush1.msra.mxu0 0.0
    %224 = vmatprep.subr.mxu0 0.0
    %225 = vmatpush1.msra.mxu0 0.0
    %226 = vmatprep.subr.mxu0 0.0
    %227 = vmatpush1.msra.mxu0 0.0
    %228 = vmatprep.subr.mxu0 0.0
    %229 = vmatpush1.msra.mxu0 0.0
    %230 = vmatprep.mubr.f32.mxu0 0.0
    %231 = vmatmul.mubr.f32.gmra.mrb[0].mxu0 %v157
    %v232 = vpop.f32.mrb[0].mxu0
    %v233 = vadd.f32 %v153, %v232
    %v234 = vpop.f32.mrb[0].mxu0
    %235 = vmatprep.mubr.f32.mxu0 0.0
    %236 = vmatmul.mubr.f32.gmra.mrb[0].mxu0 %v160
    %v237 = vpop.f32.mrb[0].mxu0
    %v238 = vadd.f32 %v153, %v237
    %v239 = vpop.f32.mrb[0].mxu0
    %240 = vdwg.mxu0
    %v241 = vmax.f32 %v233, 0.0
    %v242 = vmax.f32 %v238, 0.0
    %v243 = vld [vmem:[%s1] sm:$0xff]
    %v244 = vld [vmem:[%s1 + $0x8] sm:$0xff]
    %vm245 = vcmask 261120
    %v246 = vsel %vm245, %v241, 0.0
    %247 = vadd.xlane.f32.xlu0 %v246
    %v248 = vpop.xlane.xlu0 %247
    %v249 = vsel %vm245, %v242, 0.0
    %250 = vadd.xlane.f32.xlu0 %v249
    %v251 = vpop.xlane.xlu0 %250
    %v252 = vsel %vm245, %v243, 0.0
    %253 = vadd.xlane.f32.xlu0 %v252
    %v254 = vpop.xlane.xlu0 %253
    %v255 = vsel %vm245, %v244, 0.0
    %256 = vadd.xlane.f32.xlu0 %v255
    %v257 = vpop.xlane.xlu0 %256
    %v258 = vadd.f32 %v248, %v254
    %v259 = vadd.f32 %v251, %v257
    %v260 = vmul.f32 %v258, 0.015625
    %v261 = vmul.f32 %v259, 0.015625
    %v262 = vsub.f32 %v241, %v260
    %v263 = vsub.f32 %v242, %v261
    %v264 = vsub.f32 %v243, %v260
    %v265 = vsub.f32 %v244, %v261
    %v266 = vmul.f32 %v262, %v262
    %v267 = vmul.f32 %v263, %v263
    %v268 = vsel %vm245, %v266, 0.0
    %269 = vadd.xlane.f32.xlu0 %v268
    %v270 = vpop.xlane.xlu0 %269
    %v271 = vsel %vm245, %v267, 0.0
    %272 = vadd.xlane.f32.xlu0 %v271
    %v273 = vpop.xlane.xlu0 %272
    %v274 = vmul.f32 %v264, %v264
    %v275 = vmul.f32 %v265, %v265
    %v276 = vsel %vm245, %v274, 0.0
    %277 = vadd.xlane.f32.xlu0 %v276
    %v278 = vpop.xlane.xlu0 %277
    %v279 = vsel %vm245, %v275, 0.0
    %280 = vadd.xlane.f32.xlu0 %v279
    %v281 = vpop.xlane.xlu0 %280
    %v282 = vadd.f32 %v270, %v278
    %v283 = vadd.f32 %v273, %v281
    %v284 = vmul.f32 %v282, 0.015625
    %v285 = vmul.f32 %v283, 0.015625
    %v286 = vadd.f32 %v284, 1e-05
    %v287 = vadd.f32 %v285, 1e-05
    %v288 = vrsqrt.pop %v286
    %v289 = vrsqrt.pop %v287
    %v290 = vmul.f32 %v262, %v288
    %v291 = vmul.f32 %v263, %v289
    %v292 = vld [vmem:[#allocation7] sm:$0x1]
    %v294 = vlaneseq
    %v295 = vshrl.u32 %v294, 7
    %v296 = vsub.s32 0, %v295
    %v297 = vrot.slane %v292, %v296
    %v299 = vmul.f32 %v290, %v297
    %v300 = vmul.f32 %v291, %v297
    %v301 = vld [vmem:[#allocation8] sm:$0x1]
    %v303 = vlaneseq
    %v304 = vshrl.u32 %v303, 7
    %v305 = vsub.s32 0, %v304
    %v306 = vrot.slane %v301, %v305
    %v308 = vadd.f32 %v299, %v306
    %v309 = vadd.f32 %v300, %v306
    %v310 = vmul.f32 %v264, %v288
    %v311 = vmul.f32 %v265, %v289
    %v312 = vld [vmem:[#allocation10] sm:$0x1]
    %v314 = vlaneseq
    %v315 = vshrl.u32 %v314, 7
    %v316 = vsub.s32 0, %v315
    %v317 = vrot.slane %v312, %v316
    %v319 = vmul.f32 %v310, %v317
    %v320 = vmul.f32 %v311, %v317
    %v321 = vld [vmem:[#allocation11] sm:$0x1]
    %v323 = vlaneseq
    %v324 = vshrl.u32 %v323, 7
    %v325 = vsub.s32 0, %v324
    %v326 = vrot.slane %v321, %v325
    %v328 = vadd.f32 %v319, %v326
    %v329 = vadd.f32 %v320, %v326
    %v330 = vld [vmem:[%s8] sm:$0xff]
    %v331 = vld [vmem:[%s8 + $0x8] sm:$0xff]
    %v332 = vld [vmem:[%s8 + $0x10] sm:$0xff]
    %v333 = vld [vmem:[%s8 + $0x18] sm:$0xff]
    %v334 = vld [vmem:[#allocation13] sm:$0xff]
    %v335 = vld [vmem:[#allocation13 + $0x8] sm:$0xff]
    %v336 = vld [vmem:[#allocation13 + $0x10] sm:$0xff]
    %v337 = vld [vmem:[#allocation13 + $0x18] sm:$0xff]
    %v339 = vsel %vm245, %v328, 0
    %v342 = vsel %vm245, %v329, 0
    %344 = vmatprep.subr.mxu0 0.0
    %345 = vmatpush1.msra.mxu0 %v334
    %346 = vmatprep.subr.mxu0 0.0
    %347 = vmatpush1.msra.mxu0 %v335
    %348 = vmatprep.subr.mxu0 0.0
    %349 = vmatpush1.msra.mxu0 %v336
    %350 = vmatprep.subr.mxu0 0.0
    %351 = vmatpush1.msra.mxu0 %v337
    %352 = vmatprep.subr.mxu0 0.0
    %353 = vmatpush1.msra.mxu0 0.0
    %354 = vmatprep.subr.mxu0 0.0
    %355 = vmatpush1.msra.mxu0 0.0
    %356 = vmatprep.subr.mxu0 0.0
    %357 = vmatpush1.msra.mxu0 0.0
    %358 = vmatprep.subr.mxu0 0.0
    %359 = vmatpush1.msra.mxu0 0.0
    %360 = vmatprep.subr.mxu0 0.0
    %361 = vmatpush1.msra.mxu0 0.0
    %362 = vmatprep.subr.mxu0 0.0
    %363 = vmatpush1.msra.mxu0 0.0
    %364 = vmatprep.subr.mxu0 0.0
    %365 = vmatpush1.msra.mxu0 0.0
    %366 = vmatprep.subr.mxu0 0.0
    %367 = vmatpush1.msra.mxu0 0.0
    %368 = vmatprep.subr.mxu0 0.0
    %369 = vmatpush1.msra.mxu0 0.0
    %370 = vmatprep.subr.mxu0 0.0
    %371 = vmatpush1.msra.mxu0 0.0
    %372 = vmatprep.subr.mxu0 0.0
    %373 = vmatpush1.msra.mxu0 0.0
    %374 = vmatprep.subr.mxu0 0.0
    %375 = vmatpush1.msra.mxu0 0.0
    %376 = vmatprep.subr.mxu0 0.0
    %377 = vmatpush1.msra.mxu0 0.0
    %378 = vmatprep.subr.mxu0 0.0
    %379 = vmatpush1.msra.mxu0 0.0
    %380 = vmatprep.subr.mxu0 0.0
    %381 = vmatpush1.msra.mxu0 0.0
    %382 = vmatprep.subr.mxu0 0.0
    %383 = vmatpush1.msra.mxu0 0.0
    %384 = vmatprep.subr.mxu0 0.0
    %385 = vmatpush1.msra.mxu0 0.0
    %386 = vmatprep.subr.mxu0 0.0
    %387 = vmatpush1.msra.mxu0 0.0
    %388 = vmatprep.subr.mxu0 0.0
    %389 = vmatpush1.msra.mxu0 0.0
    %390 = vmatprep.subr.mxu0 0.0
    %391 = vmatpush1.msra.mxu0 0.0
    %392 = vmatprep.subr.mxu0 0.0
    %393 = vmatpush1.msra.mxu0 0.0
    %394 = vmatprep.subr.mxu0 0.0
    %395 = vmatpush1.msra.mxu0 0.0
    %396 = vmatprep.subr.mxu0 0.0
    %397 = vmatpush1.msra.mxu0 0.0
    %398 = vmatprep.subr.mxu0 0.0
    %399 = vmatpush1.msra.mxu0 0.0
    %400 = vmatprep.subr.mxu0 0.0
    %401 = vmatpush1.msra.mxu0 0.0
    %402 = vmatprep.subr.mxu0 0.0
    %403 = vmatpush1.msra.mxu0 0.0
    %404 = vmatprep.subr.mxu0 0.0
    %405 = vmatpush1.msra.mxu0 0.0
    %406 = vmatprep.subr.mxu0 0.0
    %407 = vmatpush1.msra.mxu0 0.0
    %408 = vmatprep.mubr.f32.mxu0 0.0
    %409 = vmatmul.mubr.f32.gmra.mrb[0].mxu0 %v339
    %v410 = vpop.f32.mrb[0].mxu0
    %v411 = vadd.f32 0.0, %v410
    %v412 = vpop.f32.mrb[0].mxu0
    %413 = vmatprep.mubr.f32.mxu0 0.0
    %414 = vmatmul.mubr.f32.gmra.mrb[0].mxu0 %v342
    %v415 = vpop.f32.mrb[0].mxu0
    %v416 = vadd.f32 0.0, %v415
    %v417 = vpop.f32.mrb[0].mxu0
    %418 = vdwg.mxu0
    %v420 = vsel %vm245, %v308, 0
    %v423 = vsel %vm245, %v309, 0
    %425 = vmatprep.subr.mxu0 0.0
    %426 = vmatpush1.msra.mxu0 %v330
    %427 = vmatprep.subr.mxu0 0.0
    %428 = vmatpush1.msra.mxu0 %v331
    %429 = vmatprep.subr.mxu0 0.0
    %430 = vmatpush1.msra.mxu0 %v332
    %431 = vmatprep.subr.mxu0 0.0
    %432 = vmatpush1.msra.mxu0 %v333
    %433 = vmatprep.subr.mxu0 0.0
    %434 = vmatpush1.msra.mxu0 0.0
    %435 = vmatprep.subr.mxu0 0.0
    %436 = vmatpush1.msra.mxu0 0.0
    %437 = vmatprep.subr.mxu0 0.0
    %438 = vmatpush1.msra.mxu0 0.0
    %439 = vmatprep.subr.mxu0 0.0
    %440 = vmatpush1.msra.mxu0 0.0
    %441 = vmatprep.subr.mxu0 0.0
    %442 = vmatpush1.msra.mxu0 0.0
    %443 = vmatprep.subr.mxu0 0.0
    %444 = vmatpush1.msra.mxu0 0.0
    %445 = vmatprep.subr.mxu0 0.0
    %446 = vmatpush1.msra.mxu0 0.0
    %447 = vmatprep.subr.mxu0 0.0
    %448 = vmatpush1.msra.mxu0 0.0
    %449 = vmatprep.subr.mxu0 0.0
    %450 = vmatpush1.msra.mxu0 0.0
    %451 = vmatprep.subr.mxu0 0.0
    %452 = vmatpush1.msra.mxu0 0.0
    %453 = vmatprep.subr.mxu0 0.0
    %454 = vmatpush1.msra.mxu0 0.0
    %455 = vmatprep.subr.mxu0 0.0
    %456 = vmatpush1.msra.mxu0 0.0
    %457 = vmatprep.subr.mxu0 0.0
    %458 = vmatpush1.msra.mxu0 0.0
    %459 = vmatprep.subr.mxu0 0.0
    %460 = vmatpush1.msra.mxu0 0.0
    %461 = vmatprep.subr.mxu0 0.0
    %462 = vmatpush1.msra.mxu0 0.0
    %463 = vmatprep.subr.mxu0 0.0
    %464 = vmatpush1.msra.mxu0 0.0
    %465 = vmatprep.subr.mxu0 0.0
    %466 = vmatpush1.msra.mxu0 0.0
    %467 = vmatprep.subr.mxu0 0.0
    %468 = vmatpush1.msra.mxu0 0.0
    %469 = vmatprep.subr.mxu0 0.0
    %470 = vmatpush1.msra.mxu0 0.0
    %471 = vmatprep.subr.mxu0 0.0
    %472 = vmatpush1.msra.mxu0 0.0
    %473 = vmatprep.subr.mxu0 0.0
    %474 = vmatpush1.msra.mxu0 0.0
    %475 = vmatprep.subr.mxu0 0.0
    %476 = vmatpush1.msra.mxu0 0.0
    %477 = vmatprep.subr.mxu0 0.0
    %478 = vmatpush1.msra.mxu0 0.0
    %479 = vmatprep.subr.mxu0 0.0
    %480 = vmatpush1.msra.mxu0 0.0
    %481 = vmatprep.subr.mxu0 0.0
    %482 = vmatpush1.msra.mxu0 0.0
    %483 = vmatprep.subr.mxu0 0.0
    %484 = vmatpush1.msra.mxu0 0.0
    %485 = vmatprep.subr.mxu0 0.0
    %486 = vmatpush1.msra.mxu0 0.0
    %487 = vmatprep.subr.mxu0 0.0
    %488 = vmatpush1.msra.mxu0 0.0
    %489 = vmatprep.mubr.f32.mxu0 0.0
    %490 = vmatmul.mubr.f32.gmra.mrb[0].mxu0 %v420
    %v491 = vpop.f32.mrb[0].mxu0
    %v492 = vadd.f32 %v411, %v491
    %v493 = vpop.f32.mrb[0].mxu0
    %494 = vmatprep.mubr.f32.mxu0 0.0
    %495 = vmatmul.mubr.f32.gmra.mrb[0].mxu0 %v423
    %v496 = vpop.f32.mrb[0].mxu0
    %v497 = vadd.f32 %v416, %v496
    %v498 = vpop.f32.mrb[0].mxu0
    %499 = vdwg.mxu0
    %v500 = vld [vmem:[%s10] sm:$0x1]
    %v502 = vlaneseq
    %v503 = vshrl.u32 %v502, 7
    %v504 = vsub.s32 0, %v503
    %v505 = vrot.slane %v500, %v504
    %v507 = vadd.f32 %v492, %v505
    %v508 = vadd.f32 %v497, %v505
    %v509 = vmax.f32 %v507, 0.0
    %v510 = vmax.f32 %v508, 0.0
    %511 = vst.msk [vmem:[#allocation16] sm:$0xff] %vm245, %v509
    %512 = vst.msk [vmem:[#allocation16 + $0x8] sm:$0xff] %vm245, %v510
    %v513 = vld [vmem:[#allocation14] sm:$0xff]
    %v514 = vld [vmem:[#allocation14 + $0x8] sm:$0xff]
    %v515 = vld [vmem:[#allocation14 + $0x10] sm:$0xff]
    %v516 = vld [vmem:[#allocation14 + $0x18] sm:$0xff]
    %v517 = vld [vmem:[%s12] sm:$0x1]
    %v519 = vlaneseq
    %v520 = vshrl.u32 %v519, 7
    %v521 = vsub.s32 0, %v520
    %v522 = vrot.slane %v517, %v521
    %v525 = vsel %vm245, %v509, 0
    %v528 = vsel %vm245, %v510, 0
    %530 = vmatprep.subr.mxu0 0.0
    %531 = vmatpush1.msra.mxu0 %v513
    %532 = vmatprep.subr.mxu0 0.0
    %533 = vmatpush1.msra.mxu0 %v514
    %534 = vmatprep.subr.mxu0 0.0
    %535 = vmatpush1.msra.mxu0 %v515
    %536 = vmatprep.subr.mxu0 0.0
    %537 = vmatpush1.msra.mxu0 %v516
    %538 = vmatprep.subr.mxu0 0.0
    %539 = vmatpush1.msra.mxu0 0.0
    %540 = vmatprep.subr.mxu0 0.0
    %541 = vmatpush1.msra.mxu0 0.0
    %542 = vmatprep.subr.mxu0 0.0
    %543 = vmatpush1.msra.mxu0 0.0
    %544 = vmatprep.subr.mxu0 0.0
    %545 = vmatpush1.msra.mxu0 0.0
    %546 = vmatprep.subr.mxu0 0.0
    %547 = vmatpush1.msra.mxu0 0.0
    %548 = vmatprep.subr.mxu0 0.0
    %549 = vmatpush1.msra.mxu0 0.0
    %550 = vmatprep.subr.mxu0 0.0
    %551 = vmatpush1.msra.mxu0 0.0
    %552 = vmatprep.subr.mxu0 0.0
    %553 = vmatpush1.msra.mxu0 0.0
    %554 = vmatprep.subr.mxu0 0.0
    %555 = vmatpush1.msra.mxu0 0.0
    %556 = vmatprep.subr.mxu0 0.0
    %557 = vmatpush1.msra.mxu0 0.0
    %558 = vmatprep.subr.mxu0 0.0
    %559 = vmatpush1.msra.mxu0 0.0
    %560 = vmatprep.subr.mxu0 0.0
    %561 = vmatpush1.msra.mxu0 0.0
    %562 = vmatprep.subr.mxu0 0.0
    %563 = vmatpush1.msra.mxu0 0.0
    %564 = vmatprep.subr.mxu0 0.0
    %565 = vmatpush1.msra.mxu0 0.0
    %566 = vmatprep.subr.mxu0 0.0
    %567 = vmatpush1.msra.mxu0 0.0
    %568 = vmatprep.subr.mxu0 0.0
    %569 = vmatpush1.msra.mxu0 0.0
    %570 = vmatprep.subr.mxu0 0.0
    %571 = vmatpush1.msra.mxu0 0.0
    %572 = vmatprep.subr.mxu0 0.0
    %573 = vmatpush1.msra.mxu0 0.0
    %574 = vmatprep.subr.mxu0 0.0
    %575 = vmatpush1.msra.mxu0 0.0
    %576 = vmatprep.subr.mxu0 0.0
    %577 = vmatpush1.msra.mxu0 0.0
    %578 = vmatprep.subr.mxu0 0.0
    %579 = vmatpush1.msra.mxu0 0.0
    %580 = vmatprep.subr.mxu0 0.0
    %581 = vmatpush1.msra.mxu0 0.0
    %582 = vmatprep.subr.mxu0 0.0
    %583 = vmatpush1.msra.mxu0 0.0
    %584 = vmatprep.subr.mxu0 0.0
    %585 = vmatpush1.msra.mxu0 0.0
    %586 = vmatprep.subr.mxu0 0.0
    %587 = vmatpush1.msra.mxu0 0.0
    %588 = vmatprep.subr.mxu0 0.0
    %589 = vmatpush1.msra.mxu0 0.0
    %590 = vmatprep.subr.mxu0 0.0
    %591 = vmatpush1.msra.mxu0 0.0
    %592 = vmatprep.subr.mxu0 0.0
    %593 = vmatpush1.msra.mxu0 0.0
    %594 = vmatprep.mubr.f32.mxu0 0.0
    %595 = vmatmul.mubr.f32.gmra.mrb[0].mxu0 %v525
    %v596 = vpop.f32.mrb[0].mxu0
    %v597 = vadd.f32 %v522, %v596
    %v598 = vpop.f32.mrb[0].mxu0
    %599 = vmatprep.mubr.f32.mxu0 0.0
    %600 = vmatmul.mubr.f32.gmra.mrb[0].mxu0 %v528
    %v601 = vpop.f32.mrb[0].mxu0
    %v602 = vadd.f32 %v522, %v601
    %v603 = vpop.f32.mrb[0].mxu0
    %604 = vdwg.mxu0
    %605 = vst.msk [vmem:[#allocation17] sm:$0xff] %vm245, %v597
    %606 = vst.msk [vmem:[#allocation17 + $0x8] sm:$0xff] %vm245, %v602
    // Predicated region
    $region86: #{tpu_custom_call.1} parent=1 // pred_check
      _
    $region87: #{tpu_custom_call.1} parent=1 // pred_check_branch
      %608 = sbr.rel (0) target = $region89
    $region88: #{tpu_custom_call.1} parent=1 // pred_region
      %s610 = ssub.s32 256, 256
      %611 = vsyncadd [#allocation4], %s610
      %s612 = sshll.u32 [#allocation16], 4
      %s613 = int_to_ptr.vmem [resolvable:$true] %s612
      %618 = dma.vmem_to_hbm [thread:$0]  %s613, 256, %s13, [#allocation4], 128, 128, 8
    $region89: #{tpu_custom_call.1} parent=1 // pred_fallthru
      _
    // Predicated region
    $region90: #{tpu_custom_call.1} parent=1 // pred_check
      _
    $region91: #{tpu_custom_call.1} parent=1 // pred_check_branch
      %620 = sbr.rel (0) target = $region93
    $region92: #{tpu_custom_call.1} parent=1 // pred_region
      %s622 = ssub.s32 256, 256
      %623 = vsyncadd [#allocation18], %s622
      %s624 = sshll.u32 [#allocation17], 4
      %s625 = int_to_ptr.vmem [resolvable:$true] %s624
      %630 = dma.vmem_to_hbm [thread:$0]  %s625, 256, %s14, [#allocation18], 128, 128, 8
    $region93: #{tpu_custom_call.1} parent=1 // pred_fallthru
      _
    // Predicated region
    $region94: #{tpu_custom_call.1} parent=1 // pred_check
      _
    $region95: #{tpu_custom_call.1} parent=1 // pred_check_branch
      %632 = sbr.rel (0) target = $region97
    $region96: #{tpu_custom_call.1} parent=1 // pred_region
      %633 = dma.done [#allocation4], 256
    $region97: #{tpu_custom_call.1} parent=1 // pred_fallthru
      _
    // Predicated region
    $region98: #{tpu_custom_call.1} parent=1 // pred_check
      _
    $region99: #{tpu_custom_call.1} parent=1 // pred_check_branch
      %635 = sbr.rel (0) target = $region101
    $region100: #{tpu_custom_call.1} parent=1 // pred_region
      %636 = dma.done [#allocation18], 256
    $region101: #{tpu_custom_call.1} parent=1 // pred_fallthru
      _
    %637 = vsyncpa [#allocation3], 1
    %638 = vsyncpa [#allocation6], 1
    %639 = vsyncpa [#allocation9], 1
    %640 = vsyncpa [#allocation12], 1
    %641 = vsyncpa [#allocation15], 1
    %642 = vsyncpa [#allocation4], 1
    %643 = vsyncpa [#allocation18], 1

</llo_original>
